<compile_context>
chip_gen: v5e
topology: v5e:2x2
jax: 0.10.0
libtpu: 0.0.40
codegen_flags: <defaults>
</compile_context>

<pallas_src>
import jax
import jax.numpy as jnp
from jax.experimental import pallas as pl
from jax.experimental.pallas import tpu as pltpu


def _round_up(v, m):
    return ((v + m - 1) // m) * m


def _vmem_budget_bytes():
    """~85% of this chip's physical per-core VMEM (generation-aware)."""
    try:
        cap = int(pltpu.get_tpu_info().vmem_capacity_bytes)
    except Exception:
        cap = 64 << 20  # conservative fallback (v7x per-TC VMEM)
    return int(cap * 0.85)


# ----------------------------------------------------------------------------
# Fused Pallas kernel: whole VGNAE_ENC forward in one call.
#
# All activations live in transposed (feature-major) layout [F_pad, N_pad] so
# the node axis (padded to 128) is the lane dimension everywhere (lane-dense
# matmuls and unmasked output stores).
# ----------------------------------------------------------------------------
def _make_fused_kernel(*, depth, link_len, K, alpha, scaling_factor, out_pad):
    def kernel(*refs):
        x_ref, a_ref = refs[0], refs[1]
        wb_refs = refs[2:2 + 2 * (depth + 1)]   # (W^T, b) per conv + fused mu/logstd
        o_ref = refs[-1]

        # a_hat^T, pre-scaled by (1 - alpha), bf16 — resident in VMEM for all
        # layers and every APPNP iteration.
        a = a_ref[...]                                      # [Np, Np]

        def propagate(h):
            # APPNP in the transposed layout: (A @ Z)^T == Z^T @ A^T, and
            # a == (1 - alpha) * A^T, so the loop body is one dot + one add.
            ah = alpha * h                                  # hoisted out of the K loop
            z = h
            for _ in range(K):
                z = jnp.dot(z.astype(jnp.bfloat16), a,
                            preferred_element_type=jnp.float32) + ah
            return z

        def linear(z, w_ref, b_ref):
            # h^T = W^T @ z^T + b ; bf16 operands, f32 accumulation.
            return (jnp.dot(w_ref[...], z.astype(jnp.bfloat16),
                            preferred_element_type=jnp.float32) + b_ref[...])

        def ngcn(z, w_ref, b_ref, relu):
            h = linear(z, w_ref, b_ref)
            # F.normalize(p=2, dim=feature) * scaling_factor; feature axis =
            # sublanes.  rsqrt(max(s,1e-24)) == 1/max(sqrt(s),1e-12) (PyTorch eps).
            inv = jax.lax.rsqrt(jnp.maximum(
                jnp.sum(h * h, axis=0, keepdims=True), 1e-24))     # EUP
            z = propagate(h * (inv * scaling_factor))
            return jnp.maximum(z, 0.0) if relu else z

        def ngcn_two_head(z, w_ref, b_ref):
            # Fused mu/logstd head: one linear + one shared set of APPNP
            # matmuls; per-head L2-normalize via two sublane-aligned slices
            # (out_pad is a multiple of 16) instead of iota + selects.
            h = linear(z, w_ref, b_ref)
            h_mu, h_ls = h[:out_pad], h[out_pad:]
            inv_mu = jax.lax.rsqrt(jnp.maximum(
                jnp.sum(h_mu * h_mu, axis=0, keepdims=True), 1e-24))
            inv_ls = jax.lax.rsqrt(jnp.maximum(
                jnp.sum(h_ls * h_ls, axis=0, keepdims=True), 1e-24))
            h = jnp.concatenate([h_mu * (inv_mu * scaling_factor),
                                 h_ls * (inv_ls * scaling_factor)], axis=0)
            return propagate(h)

        # ---- VGNAE_ENC chain (static structure baked in at trace time;
        #      matches the PyTorch forward exactly — the residual check only
        #      happens for i in [1, depth-2], never before the last conv) ----
        out = ngcn(x_ref[...], wb_refs[0], wb_refs[1], True)
        res, res_ind = out.astype(jnp.bfloat16), 0          # long-lived temp in bf16
        for i in range(1, depth - 1):
            if i == res_ind + link_len:
                out = out + res.astype(jnp.float32)
            out = ngcn(out, wb_refs[2 * i], wb_refs[2 * i + 1], True)
            if i == res_ind + link_len:
                res, res_ind = out.astype(jnp.bfloat16), i
        out = ngcn(out, wb_refs[2 * (depth - 1)], wb_refs[2 * (depth - 1) + 1], False)

        o_ref[...] = ngcn_two_head(out, wb_refs[2 * depth], wb_refs[2 * depth + 1])

    return kernel


# ----------------------------------------------------------------------------
# Wrapper: pads / transposes / casts the static operands ONCE, returns a
# jitted forward(x) -> (mu, logstd).
# ----------------------------------------------------------------------------
def make_vgnae_enc_forward(a_hat, params, *, depth=3, link_len=2, K=2,
                           alpha=0.15, scaling_factor=1.8):
    assert depth > link_len, "Link length cannot be bigger than depth"
    assert len(params["convs"]) == depth

    n = a_hat.shape[0]
    fin = params["convs"][0][0].shape[0]
    hidden = params["convs"][0][0].shape[1]
    out_dim = params["mu"][0].shape[1]

    np_ = _round_up(max(n, 1), 128)     # node axis -> lanes, multiple of 128
    fin_p = _round_up(fin, 16)          # feature axes -> sublanes (bf16 tile = 16)
    hid_p = _round_up(hidden, 16)
    out_p = _round_up(out_dim, 16)

    # a_hat^T, zero-padded, pre-scaled by (1 - alpha) in f32, then cast bf16.
    # Storing the transpose makes z @ a == (A @ z^T)^T correct for any (not
    # necessarily symmetric) normalized adjacency.  Zero padded rows/cols keep
    # bias-driven garbage in padded node columns from contaminating real nodes.
    a_pad = (jnp.zeros((np_, np_), jnp.float32)
             .at[:n, :n].set((1.0 - alpha) * a_hat.T.astype(jnp.float32))
             ).astype(jnp.bfloat16)

    def pad_wb(w, b, fi_p, fo_p):
        fi, fo = w.shape
        w_t = (jnp.zeros((fo_p, fi_p), jnp.float32)
               .at[:fo, :fi].set(w.T)).astype(jnp.bfloat16)
        b_p = jnp.zeros((fo_p, 1), jnp.float32).at[:fo, 0].set(b)
        return w_t, b_p

    static_ins = [a_pad]
    in_p = fin_p
    for (w, b) in params["convs"]:
        w_t, b_p = pad_wb(w, b, in_p, hid_p)
        static_ins += [w_t, b_p]
        in_p = hid_p

    # Concatenated mu / logstd head: [2*out_p, hid_p] so both heads share the
    # same linear + APPNP matmuls.
    w_mu, b_mu = params["mu"]
    w_ls, b_ls = params["logstd"]
    wml = jnp.zeros((2 * out_p, hid_p), jnp.float32)
    wml = wml.at[:out_dim, :hidden].set(w_mu.T)
    wml = wml.at[out_p:out_p + out_dim, :hidden].set(w_ls.T)
    bml = jnp.zeros((2 * out_p, 1), jnp.float32)
    bml = bml.at[:out_dim, 0].set(b_mu)
    bml = bml.at[out_p:out_p + out_dim, 0].set(b_ls)
    static_ins += [wml.astype(jnp.bfloat16), bml]
    static_ins = tuple(jax.device_put(a) for a in static_ins)

    kernel = _make_fused_kernel(depth=depth, link_len=link_len, K=K,
                                alpha=alpha, scaling_factor=scaling_factor,
                                out_pad=out_p)

    # VMEM budget: nothing here is double-buffered (full-array VMEM specs), so
    # the working set is inputs + output + live f32 activation temporaries +
    # a little compiler scratch, clamped to ~85% of physical VMEM.
    out_bytes = 2 * out_p * np_ * 4
    in_bytes = (fin_p * np_ * 2
                + sum(int(a.size) * a.dtype.itemsize for a in static_ins))
    f_max = max(fin_p, hid_p, 2 * out_p)
    act_bytes = 8 * f_max * np_ * 4
    budget = _vmem_budget_bytes()
    vmem_limit = int(min(budget,
                         max(16 << 20, in_bytes + out_bytes + act_bytes + (4 << 20))))
    # TODO(synk): if in_bytes + act_bytes exceeds `budget` (large Np,
    #             especially on v7x's 64 MiB), switch to the streamed-a_hat /
    #             dual-TensorCore path instead of the fully-resident one.

    vmem = pl.BlockSpec(memory_space=pltpu.MemorySpace.VMEM)
    call = pl.pallas_call(
        kernel,
        out_shape=jax.ShapeDtypeStruct((2 * out_p, np_), jnp.float32),
        in_specs=[vmem] * (1 + len(static_ins)),
        out_specs=vmem,
        compiler_params=pltpu.CompilerParams(vmem_limit_bytes=vmem_limit),
    )

    def _fwd(x, statics):
        # Only the per-call work lives here: pad/transpose/cast x, run the
        # fused kernel, slice the two heads back out of the padded result.
        x_t = (jnp.zeros((fin_p, np_), jnp.float32)
               .at[:fin, :n].set(x.T.astype(jnp.float32))).astype(jnp.bfloat16)
        out = call(x_t, *statics)
        mu = out[:out_dim, :n].T
        logstd = out[out_p:out_p + out_dim, :n].T
        return mu, logstd

    fwd = jax.jit(_fwd)
    return lambda x: fwd(x, static_ins)


# ----------------------------------------------------------------------------
# Glue: GCN-normalized dense adjacency + parameter init.
# ----------------------------------------------------------------------------
def build_gcn_adj(edge_index, num_nodes):
    """D^-1/2 (A + I) D^-1/2 as a dense [N, N] matrix (PyG gcn_norm semantics)."""
    src = edge_index[0]
    dst = edge_index[1]
    loops = jnp.arange(num_nodes, dtype=edge_index.dtype)
    src = jnp.concatenate([src, loops])
    dst = jnp.concatenate([dst, loops])
    adj = jnp.zeros((num_nodes, num_nodes), jnp.float32).at[dst, src].add(1.0)
    deg = adj.sum(axis=1)
    d_inv_sqrt = jnp.where(deg > 0, 1.0 / jnp.sqrt(deg), 0.0)
    return d_inv_sqrt[:, None] * adj * d_inv_sqrt[None, :]


def _init_linear(key, in_dim, out_dim):
    # Deterministic nn.Linear-style init: U(-1/sqrt(in), 1/sqrt(in)).
    kw, kb = jax.random.split(key)
    bound = 1.0 / jnp.sqrt(jnp.float32(in_dim))
    w = jax.random.uniform(kw, (in_dim, out_dim), jnp.float32, -bound, bound)
    b = jax.random.uniform(kb, (out_dim,), jnp.float32, -bound, bound)
    return w, b


def init_vgnae_params(key, in_dim, hidden_dim, out_dim, depth=3):
    keys = jax.random.split(key, depth + 2)
    convs = [_init_linear(keys[0], in_dim, hidden_dim)]
    for i in range(1, depth):
        convs.append(_init_linear(keys[i], hidden_dim, hidden_dim))
    mu = _init_linear(keys[depth], hidden_dim, out_dim)
    logstd = _init_linear(keys[depth + 1], hidden_dim, out_dim)
    return {"convs": convs, "mu": mu, "logstd": logstd}


# ----------------------------------------------------------------------------
# Main
# ----------------------------------------------------------------------------
if __name__ == "__main__":
    num_nodes, in_dim, hidden_dim, out_dim = 16, 8, 32, 16
    depth, link_len, K, alpha = 3, 2, 2, 0.15

    key = jax.random.PRNGKey(0)
    k_x, k_p = jax.random.split(key)

    # Node features.
    x = jax.random.normal(k_x, (num_nodes, in_dim), jnp.float32)

    # Deterministic bidirectional ring graph: edge_index is [2, num_edges].
    idx = jnp.arange(num_nodes, dtype=jnp.int32)
    nxt = (idx + 1) % num_nodes
    edge_index = jnp.stack([jnp.concatenate([idx, nxt]),
                            jnp.concatenate([nxt, idx])], axis=0)

    a_hat = build_gcn_adj(edge_index, num_nodes)
    params = init_vgnae_params(k_p, in_dim, hidden_dim, out_dim, depth=depth)

    # Static operands padded / cast ONCE here; per-call path only pads x.
    forward = make_vgnae_enc_forward(a_hat, params, depth=depth,
                                     link_len=link_len, K=K, alpha=alpha)
    mu, logstd = forward(x)
    jax.block_until_ready((mu, logstd))

    assert mu.shape == (num_nodes, out_dim)
    assert logstd.shape == (num_nodes, out_dim)
    assert bool(jnp.all(jnp.isfinite(mu))) and bool(jnp.all(jnp.isfinite(logstd)))
    print("KERNEL_OK")
</pallas_src>

<mosaic_0001>
module attributes {stable_mosaic.version = 11 : i64} {
  func.func @kernel(%arg0: memref<16x128xbf16, #tpu.memory_space<vmem>>, %arg1: memref<128x128xbf16, #tpu.memory_space<vmem>>, %arg2: memref<32x16xbf16, #tpu.memory_space<vmem>>, %arg3: memref<32x1xf32, #tpu.memory_space<vmem>>, %arg4: memref<32x32xbf16, #tpu.memory_space<vmem>>, %arg5: memref<32x1xf32, #tpu.memory_space<vmem>>, %arg6: memref<32x32xbf16, #tpu.memory_space<vmem>>, %arg7: memref<32x1xf32, #tpu.memory_space<vmem>>, %arg8: memref<32x32xbf16, #tpu.memory_space<vmem>>, %arg9: memref<32x1xf32, #tpu.memory_space<vmem>>, %arg10: memref<32x128xf32, #tpu.memory_space<vmem>>) attributes {dimension_semantics = [], scalar_prefetch = 0 : i64, scratch_operands = 0 : i64, tpu.core_type = #tpu.core_type<tc>} {
    %c0 = arith.constant 0 : index
    %c0_0 = arith.constant 0 : index
    %0 = vector.load %arg1[%c0, %c0_0] : memref<128x128xbf16, #tpu.memory_space<vmem>>, vector<128x128xbf16>
    %c0_1 = arith.constant 0 : index
    %c0_2 = arith.constant 0 : index
    %1 = vector.load %arg0[%c0_1, %c0_2] : memref<16x128xbf16, #tpu.memory_space<vmem>>, vector<16x128xbf16>
    %c0_3 = arith.constant 0 : index
    %c0_4 = arith.constant 0 : index
    %2 = vector.load %arg2[%c0_3, %c0_4] : memref<32x16xbf16, #tpu.memory_space<vmem>>, vector<32x16xbf16>
    %cst = arith.constant dense<0.000000e+00> : vector<32x128xf32>
    %3 = tpu.matmul %2, %1, %cst {dimension_numbers = #tpu.dot_dimension_numbers<[1], [0], [0], [1], [0, 0, 1, 1], [], []>} : vector<32x16xbf16>, vector<16x128xbf16>, vector<32x128xf32> -> vector<32x128xf32>
    %c0_5 = arith.constant 0 : index
    %c0_6 = arith.constant 0 : index
    %4 = vector.load %arg3[%c0_5, %c0_6] : memref<32x1xf32, #tpu.memory_space<vmem>>, vector<32x1xf32>
    %5 = vector.broadcast %4 : vector<32x1xf32> to vector<32x128xf32>
    %6 = arith.addf %3, %5 : vector<32x128xf32>
    %7 = arith.mulf %6, %6 : vector<32x128xf32>
    %cst_7 = arith.constant dense<0.000000e+00> : vector<128xf32>
    %8 = vector.multi_reduction <add>, %7, %cst_7 [0] : vector<32x128xf32> to vector<128xf32>
    %9 = vector.shape_cast %8 : vector<128xf32> to vector<1x128xf32>
    %cst_8 = arith.constant 1.000000e-24 : f32
    %10 = vector.broadcast %cst_8 : f32 to vector<1x128xf32>
    %11 = arith.maximumf %9, %10 : vector<1x128xf32>
    %12 = math.rsqrt %11 : vector<1x128xf32>
    %cst_9 = arith.constant 1.800000e+00 : f32
    %13 = vector.broadcast %cst_9 : f32 to vector<1x128xf32>
    %14 = arith.mulf %12, %13 : vector<1x128xf32>
    %15 = vector.broadcast %14 : vector<1x128xf32> to vector<32x128xf32>
    %16 = arith.mulf %6, %15 : vector<32x128xf32>
    %cst_10 = arith.constant 1.500000e-01 : f32
    %17 = vector.broadcast %cst_10 : f32 to vector<32x128xf32>
    %18 = arith.mulf %17, %16 : vector<32x128xf32>
    %19 = arith.truncf %16 : vector<32x128xf32> to vector<32x128xbf16>
    %cst_11 = arith.constant dense<0.000000e+00> : vector<32x128xf32>
    %20 = tpu.matmul %19, %0, %cst_11 {dimension_numbers = #tpu.dot_dimension_numbers<[1], [0], [0], [1], [0, 0, 1, 1], [], []>} : vector<32x128xbf16>, vector<128x128xbf16>, vector<32x128xf32> -> vector<32x128xf32>
    %21 = arith.addf %20, %18 : vector<32x128xf32>
    %22 = arith.truncf %21 : vector<32x128xf32> to vector<32x128xbf16>
    %cst_12 = arith.constant dense<0.000000e+00> : vector<32x128xf32>
    %23 = tpu.matmul %22, %0, %cst_12 {dimension_numbers = #tpu.dot_dimension_numbers<[1], [0], [0], [1], [0, 0, 1, 1], [], []>} : vector<32x128xbf16>, vector<128x128xbf16>, vector<32x128xf32> -> vector<32x128xf32>
    %24 = arith.addf %23, %18 : vector<32x128xf32>
    %cst_13 = arith.constant 0.000000e+00 : f32
    %25 = vector.broadcast %cst_13 : f32 to vector<32x128xf32>
    %26 = arith.maximumf %24, %25 : vector<32x128xf32>
    %c0_14 = arith.constant 0 : index
    %c0_15 = arith.constant 0 : index
    %27 = vector.load %arg4[%c0_14, %c0_15] : memref<32x32xbf16, #tpu.memory_space<vmem>>, vector<32x32xbf16>
    %28 = arith.truncf %26 : vector<32x128xf32> to vector<32x128xbf16>
    %cst_16 = arith.constant dense<0.000000e+00> : vector<32x128xf32>
    %29 = tpu.matmul %27, %28, %cst_16 {dimension_numbers = #tpu.dot_dimension_numbers<[1], [0], [0], [1], [0, 0, 1, 1], [], []>} : vector<32x32xbf16>, vector<32x128xbf16>, vector<32x128xf32> -> vector<32x128xf32>
    %c0_17 = arith.constant 0 : index
    %c0_18 = arith.constant 0 : index
    %30 = vector.load %arg5[%c0_17, %c0_18] : memref<32x1xf32, #tpu.memory_space<vmem>>, vector<32x1xf32>
    %31 = vector.broadcast %30 : vector<32x1xf32> to vector<32x128xf32>
    %32 = arith.addf %29, %31 : vector<32x128xf32>
    %33 = arith.mulf %32, %32 : vector<32x128xf32>
    %cst_19 = arith.constant dense<0.000000e+00> : vector<128xf32>
    %34 = vector.multi_reduction <add>, %33, %cst_19 [0] : vector<32x128xf32> to vector<128xf32>
    %35 = vector.shape_cast %34 : vector<128xf32> to vector<1x128xf32>
    %cst_20 = arith.constant 1.000000e-24 : f32
    %36 = vector.broadcast %cst_20 : f32 to vector<1x128xf32>
    %37 = arith.maximumf %35, %36 : vector<1x128xf32>
    %38 = math.rsqrt %37 : vector<1x128xf32>
    %cst_21 = arith.constant 1.800000e+00 : f32
    %39 = vector.broadcast %cst_21 : f32 to vector<1x128xf32>
    %40 = arith.mulf %38, %39 : vector<1x128xf32>
    %41 = vector.broadcast %40 : vector<1x128xf32> to vector<32x128xf32>
    %42 = arith.mulf %32, %41 : vector<32x128xf32>
    %cst_22 = arith.constant 1.500000e-01 : f32
    %43 = vector.broadcast %cst_22 : f32 to vector<32x128xf32>
    %44 = arith.mulf %43, %42 : vector<32x128xf32>
    %45 = arith.truncf %42 : vector<32x128xf32> to vector<32x128xbf16>
    %cst_23 = arith.constant dense<0.000000e+00> : vector<32x128xf32>
    %46 = tpu.matmul %45, %0, %cst_23 {dimension_numbers = #tpu.dot_dimension_numbers<[1], [0], [0], [1], [0, 0, 1, 1], [], []>} : vector<32x128xbf16>, vector<128x128xbf16>, vector<32x128xf32> -> vector<32x128xf32>
    %47 = arith.addf %46, %44 : vector<32x128xf32>
    %48 = arith.truncf %47 : vector<32x128xf32> to vector<32x128xbf16>
    %cst_24 = arith.constant dense<0.000000e+00> : vector<32x128xf32>
    %49 = tpu.matmul %48, %0, %cst_24 {dimension_numbers = #tpu.dot_dimension_numbers<[1], [0], [0], [1], [0, 0, 1, 1], [], []>} : vector<32x128xbf16>, vector<128x128xbf16>, vector<32x128xf32> -> vector<32x128xf32>
    %50 = arith.addf %49, %44 : vector<32x128xf32>
    %cst_25 = arith.constant 0.000000e+00 : f32
    %51 = vector.broadcast %cst_25 : f32 to vector<32x128xf32>
    %52 = arith.maximumf %50, %51 : vector<32x128xf32>
    %c0_26 = arith.constant 0 : index
    %c0_27 = arith.constant 0 : index
    %53 = vector.load %arg6[%c0_26, %c0_27] : memref<32x32xbf16, #tpu.memory_space<vmem>>, vector<32x32xbf16>
    %54 = arith.truncf %52 : vector<32x128xf32> to vector<32x128xbf16>
    %cst_28 = arith.constant dense<0.000000e+00> : vector<32x128xf32>
    %55 = tpu.matmul %53, %54, %cst_28 {dimension_numbers = #tpu.dot_dimension_numbers<[1], [0], [0], [1], [0, 0, 1, 1], [], []>} : vector<32x32xbf16>, vector<32x128xbf16>, vector<32x128xf32> -> vector<32x128xf32>
    %c0_29 = arith.constant 0 : index
    %c0_30 = arith.constant 0 : index
    %56 = vector.load %arg7[%c0_29, %c0_30] : memref<32x1xf32, #tpu.memory_space<vmem>>, vector<32x1xf32>
    %57 = vector.broadcast %56 : vector<32x1xf32> to vector<32x128xf32>
    %58 = arith.addf %55, %57 : vector<32x128xf32>
    %59 = arith.mulf %58, %58 : vector<32x128xf32>
    %cst_31 = arith.constant dense<0.000000e+00> : vector<128xf32>
    %60 = vector.multi_reduction <add>, %59, %cst_31 [0] : vector<32x128xf32> to vector<128xf32>
    %61 = vector.shape_cast %60 : vector<128xf32> to vector<1x128xf32>
    %cst_32 = arith.constant 1.000000e-24 : f32
    %62 = vector.broadcast %cst_32 : f32 to vector<1x128xf32>
    %63 = arith.maximumf %61, %62 : vector<1x128xf32>
    %64 = math.rsqrt %63 : vector<1x128xf32>
    %cst_33 = arith.constant 1.800000e+00 : f32
    %65 = vector.broadcast %cst_33 : f32 to vector<1x128xf32>
    %66 = arith.mulf %64, %65 : vector<1x128xf32>
    %67 = vector.broadcast %66 : vector<1x128xf32> to vector<32x128xf32>
    %68 = arith.mulf %58, %67 : vector<32x128xf32>
    %cst_34 = arith.constant 1.500000e-01 : f32
    %69 = vector.broadcast %cst_34 : f32 to vector<32x128xf32>
    %70 = arith.mulf %69, %68 : vector<32x128xf32>
    %71 = arith.truncf %68 : vector<32x128xf32> to vector<32x128xbf16>
    %cst_35 = arith.constant dense<0.000000e+00> : vector<32x128xf32>
    %72 = tpu.matmul %71, %0, %cst_35 {dimension_numbers = #tpu.dot_dimension_numbers<[1], [0], [0], [1], [0, 0, 1, 1], [], []>} : vector<32x128xbf16>, vector<128x128xbf16>, vector<32x128xf32> -> vector<32x128xf32>
    %73 = arith.addf %72, %70 : vector<32x128xf32>
    %74 = arith.truncf %73 : vector<32x128xf32> to vector<32x128xbf16>
    %cst_36 = arith.constant dense<0.000000e+00> : vector<32x128xf32>
    %75 = tpu.matmul %74, %0, %cst_36 {dimension_numbers = #tpu.dot_dimension_numbers<[1], [0], [0], [1], [0, 0, 1, 1], [], []>} : vector<32x128xbf16>, vector<128x128xbf16>, vector<32x128xf32> -> vector<32x128xf32>
    %76 = arith.addf %75, %70 : vector<32x128xf32>
    %c0_37 = arith.constant 0 : index
    %c0_38 = arith.constant 0 : index
    %77 = vector.load %arg8[%c0_37, %c0_38] : memref<32x32xbf16, #tpu.memory_space<vmem>>, vector<32x32xbf16>
    %78 = arith.truncf %76 : vector<32x128xf32> to vector<32x128xbf16>
    %cst_39 = arith.constant dense<0.000000e+00> : vector<32x128xf32>
    %79 = tpu.matmul %77, %78, %cst_39 {dimension_numbers = #tpu.dot_dimension_numbers<[1], [0], [0], [1], [0, 0, 1, 1], [], []>} : vector<32x32xbf16>, vector<32x128xbf16>, vector<32x128xf32> -> vector<32x128xf32>
    %c0_40 = arith.constant 0 : index
    %c0_41 = arith.constant 0 : index
    %80 = vector.load %arg9[%c0_40, %c0_41] : memref<32x1xf32, #tpu.memory_space<vmem>>, vector<32x1xf32>
    %81 = vector.broadcast %80 : vector<32x1xf32> to vector<32x128xf32>
    %82 = arith.addf %79, %81 : vector<32x128xf32>
    %83 = vector.extract_strided_slice %82 {offsets = [0, 0], sizes = [16, 128], strides = [1, 1]} : vector<32x128xf32> to vector<16x128xf32>
    %84 = vector.extract_strided_slice %82 {offsets = [16, 0], sizes = [16, 128], strides = [1, 1]} : vector<32x128xf32> to vector<16x128xf32>
    %85 = arith.mulf %83, %83 : vector<16x128xf32>
    %cst_42 = arith.constant dense<0.000000e+00> : vector<128xf32>
    %86 = vector.multi_reduction <add>, %85, %cst_42 [0] : vector<16x128xf32> to vector<128xf32>
    %87 = vector.shape_cast %86 : vector<128xf32> to vector<1x128xf32>
    %cst_43 = arith.constant 1.000000e-24 : f32
    %88 = vector.broadcast %cst_43 : f32 to vector<1x128xf32>
    %89 = arith.maximumf %87, %88 : vector<1x128xf32>
    %90 = math.rsqrt %89 : vector<1x128xf32>
    %91 = arith.mulf %84, %84 : vector<16x128xf32>
    %cst_44 = arith.constant dense<0.000000e+00> : vector<128xf32>
    %92 = vector.multi_reduction <add>, %91, %cst_44 [0] : vector<16x128xf32> to vector<128xf32>
    %93 = vector.shape_cast %92 : vector<128xf32> to vector<1x128xf32>
    %cst_45 = arith.constant 1.000000e-24 : f32
    %94 = vector.broadcast %cst_45 : f32 to vector<1x128xf32>
    %95 = arith.maximumf %93, %94 : vector<1x128xf32>
    %96 = math.rsqrt %95 : vector<1x128xf32>
    %cst_46 = arith.constant 1.800000e+00 : f32
    %97 = vector.broadcast %cst_46 : f32 to vector<1x128xf32>
    %98 = arith.mulf %90, %97 : vector<1x128xf32>
    %99 = vector.broadcast %98 : vector<1x128xf32> to vector<16x128xf32>
    %100 = arith.mulf %83, %99 : vector<16x128xf32>
    %cst_47 = arith.constant 1.800000e+00 : f32
    %101 = vector.broadcast %cst_47 : f32 to vector<1x128xf32>
    %102 = arith.mulf %96, %101 : vector<1x128xf32>
    %103 = vector.broadcast %102 : vector<1x128xf32> to vector<16x128xf32>
    %104 = arith.mulf %84, %103 : vector<16x128xf32>
    %105 = tpu.concatenate %100, %104 in 0 : vector<16x128xf32>, vector<16x128xf32> -> vector<32x128xf32>
    %cst_48 = arith.constant 1.500000e-01 : f32
    %106 = vector.broadcast %cst_48 : f32 to vector<32x128xf32>
    %107 = arith.mulf %106, %105 : vector<32x128xf32>
    %108 = arith.truncf %105 : vector<32x128xf32> to vector<32x128xbf16>
    %cst_49 = arith.constant dense<0.000000e+00> : vector<32x128xf32>
    %109 = tpu.matmul %108, %0, %cst_49 {dimension_numbers = #tpu.dot_dimension_numbers<[1], [0], [0], [1], [0, 0, 1, 1], [], []>} : vector<32x128xbf16>, vector<128x128xbf16>, vector<32x128xf32> -> vector<32x128xf32>
    %110 = arith.addf %109, %107 : vector<32x128xf32>
    %111 = arith.truncf %110 : vector<32x128xf32> to vector<32x128xbf16>
    %cst_50 = arith.constant dense<0.000000e+00> : vector<32x128xf32>
    %112 = tpu.matmul %111, %0, %cst_50 {dimension_numbers = #tpu.dot_dimension_numbers<[1], [0], [0], [1], [0, 0, 1, 1], [], []>} : vector<32x128xbf16>, vector<128x128xbf16>, vector<32x128xf32> -> vector<32x128xf32>
    %113 = arith.addf %112, %107 : vector<32x128xf32>
    %c0_51 = arith.constant 0 : index
    %c0_52 = arith.constant 0 : index
    %114 = vector.load %arg10[%c0_51, %c0_52] : memref<32x128xf32, #tpu.memory_space<vmem>>, vector<32x128xf32>
    tpu.vector_store %arg10[%c0_51, %c0_52], %113 {strides = array<i32>} : memref<32x128xf32, #tpu.memory_space<vmem>>, vector<32x128xf32>,
    return
  }
}

</mosaic_0001>

<llo_original>
// kernel: _fwd.1
$region0: #{_fwd.1}
  #allocation0 [shape = 'u32[]', space=smem, size = 0x4, offset = 0x4, fixed_abs, tag = 'smem constant byte address 0x4 - core index']
  #allocation1 [shape = 'u32[72,128]{1,0:T(1,128)}', space=vmem, size = 0x9000, scoped, tag = 'internal scratch']
  %s0 = inlined_call_operand.vmem [shape: bf16[16,128], index: 0, kind: input, shape index: {}]
  %s1 = inlined_call_operand.vmem [shape: bf16[128,128], index: 1, kind: input, shape index: {}]
  %s2 = inlined_call_operand.vmem [shape: bf16[32,16], index: 2, kind: input, shape index: {}]
  %s3 = inlined_call_operand.vmem [shape: f32[32,1], index: 3, kind: input, shape index: {}]
  %s4 = inlined_call_operand.vmem [shape: bf16[32,32], index: 4, kind: input, shape index: {}]
  %s5 = inlined_call_operand.vmem [shape: f32[32,1], index: 5, kind: input, shape index: {}]
  %s6 = inlined_call_operand.vmem [shape: bf16[32,32], index: 6, kind: input, shape index: {}]
  %s7 = inlined_call_operand.vmem [shape: f32[32,1], index: 7, kind: input, shape index: {}]
  %s8 = inlined_call_operand.vmem [shape: bf16[32,32], index: 8, kind: input, shape index: {}]
  %s9 = inlined_call_operand.vmem [shape: f32[32,1], index: 9, kind: input, shape index: {}]
  %s10 = inlined_call_operand.vmem [shape: f32[32,128], index: 10, kind: output, shape index: {}]
  %s11 = sld [smem:[#allocation0]]
  $region50: #{_fwd.1} parent=0
    _
  %s13 = ssub.s32 1, %s11
  %s14 = scalar_select 0, %s13, %s11
  // Predicated region
  $region2: #{_fwd.1} parent=0 // pred_check
    _
  $region3: #{_fwd.1} parent=0 // pred_check_branch
    %16 = sbr.rel (0) target = $region5
  $region4: #{_fwd.1} parent=0 // pred_region
    _
  $region5: #{_fwd.1} parent=0 // pred_fallthru
    _
  // Predicated region
  $region6: #{_fwd.1} parent=0 // pred_check
    _
  $region7: #{_fwd.1} parent=0 // pred_check_branch
    %18 = sbr.rel (0) target = $region9
  $region8: #{_fwd.1} parent=0 // pred_region
    _
  $region9: #{_fwd.1} parent=0 // pred_fallthru
    _
  // Predicated region
  $region10: #{_fwd.1} parent=0 // pred_check
    _
  $region11: #{_fwd.1} parent=0 // pred_check_branch
    %20 = sbr.rel (0) target = $region13
  $region12: #{_fwd.1} parent=0 // pred_region
    _
  $region13: #{_fwd.1} parent=0 // pred_fallthru
    _
  // Predicated region
  $region14: #{_fwd.1} parent=0 // pred_check
    _
  $region15: #{_fwd.1} parent=0 // pred_check_branch
    %22 = sbr.rel (0) target = $region17
  $region16: #{_fwd.1} parent=0 // pred_region
    _
  $region17: #{_fwd.1} parent=0 // pred_fallthru
    _
  // Predicated region
  $region18: #{_fwd.1} parent=0 // pred_check
    _
  $region19: #{_fwd.1} parent=0 // pred_check_branch
    %24 = sbr.rel (0) target = $region21
  $region20: #{_fwd.1} parent=0 // pred_region
    _
  $region21: #{_fwd.1} parent=0 // pred_fallthru
    _
  // Predicated region
  $region22: #{_fwd.1} parent=0 // pred_check
    _
  $region23: #{_fwd.1} parent=0 // pred_check_branch
    %26 = sbr.rel (0) target = $region25
  $region24: #{_fwd.1} parent=0 // pred_region
    _
  $region25: #{_fwd.1} parent=0 // pred_fallthru
    _
  // Predicated region
  $region26: #{_fwd.1} parent=0 // pred_check
    _
  $region27: #{_fwd.1} parent=0 // pred_check_branch
    %28 = sbr.rel (0) target = $region29
  $region28: #{_fwd.1} parent=0 // pred_region
    _
  $region29: #{_fwd.1} parent=0 // pred_fallthru
    _
  // Predicated region
  $region30: #{_fwd.1} parent=0 // pred_check
    _
  $region31: #{_fwd.1} parent=0 // pred_check_branch
    %30 = sbr.rel (0) target = $region33
  $region32: #{_fwd.1} parent=0 // pred_region
    _
  $region33: #{_fwd.1} parent=0 // pred_fallthru
    _
  // Predicated region
  $region34: #{_fwd.1} parent=0 // pred_check
    _
  $region35: #{_fwd.1} parent=0 // pred_check_branch
    %32 = sbr.rel (0) target = $region37
  $region36: #{_fwd.1} parent=0 // pred_region
    _
  $region37: #{_fwd.1} parent=0 // pred_fallthru
    _
  // Predicated region
  $region38: #{_fwd.1} parent=0 // pred_check
    _
  $region39: #{_fwd.1} parent=0 // pred_check_branch
    %34 = sbr.rel (0) target = $region41
  $region40: #{_fwd.1} parent=0 // pred_region
    _
  $region41: #{_fwd.1} parent=0 // pred_fallthru
    _
  %v36 = vld [vmem:[%s1] sm:$0xf]
  %v37 = vld [vmem:[%s1 + $0x4] sm:$0xf]
  %v38 = vld [vmem:[%s1 + $0x8] sm:$0xf]
  %v39 = vld [vmem:[%s1 + $0xc] sm:$0xf]
  %v40 = vld [vmem:[%s1 + $0x10] sm:$0xf]
  %v41 = vld [vmem:[%s1 + $0x14] sm:$0xf]
  %v42 = vld [vmem:[%s1 + $0x18] sm:$0xf]
  %v43 = vld [vmem:[%s1 + $0x1c] sm:$0xf]
  %v44 = vld [vmem:[%s1 + $0x20] sm:$0xf]
  %v45 = vld [vmem:[%s1 + $0x24] sm:$0xf]
  %v46 = vld [vmem:[%s1 + $0x28] sm:$0xf]
  %v47 = vld [vmem:[%s1 + $0x2c] sm:$0xf]
  %v48 = vld [vmem:[%s1 + $0x30] sm:$0xf]
  %v49 = vld [vmem:[%s1 + $0x34] sm:$0xf]
  %v50 = vld [vmem:[%s1 + $0x38] sm:$0xf]
  %v51 = vld [vmem:[%s1 + $0x3c] sm:$0xf]
  %v52 = vld [vmem:[%s0] sm:$0xf]
  %v53 = vld [vmem:[%s0 + $0x4] sm:$0xf]
  %v54 = vld [vmem:[%s2] sm:$0xf]
  %v55 = vld [vmem:[%s2 + $0x4] sm:$0xf]
  %v56 = vld [vmem:[%s2 + $0x8] sm:$0xf]
  %v57 = vld [vmem:[%s2 + $0xc] sm:$0xf]
  %v58 = vld [vmem:[%s3] sm:$0xff]
  %v59 = vld [vmem:[%s3 + $0x8] sm:$0xff]
  %v60 = vld [vmem:[%s3 + $0x10] sm:$0xff]
  %v61 = vld [vmem:[%s3 + $0x18] sm:$0xff]
  %63 = vset.pattern.permute.xlu0 0
  %64 = vperm.xlu0 %63, %v58
  %v65 = vpop.permute.xlu0 %64
  %68 = vset.pattern.permute.xlu0 0
  %69 = vperm.xlu0 %68, %v59
  %v70 = vpop.permute.xlu0 %69
  %73 = vset.pattern.permute.xlu0 0
  %74 = vperm.xlu0 %73, %v60
  %v75 = vpop.permute.xlu0 %74
  %78 = vset.pattern.permute.xlu0 0
  %79 = vperm.xlu0 %78, %v61
  %v80 = vpop.permute.xlu0 %79
  %v86 = vunpack.c.l.b16 %v54
  %v87 = vunpack.c.l.b16 %v55
  %v88 = vunpack.c.l.b16 %v56
  %v89 = vunpack.c.l.b16 %v57
  %v90 = vpack.c.b16 %v87, %v86
  %v91 = vpack.c.b16 %v89, %v88
  %v94 = vunpack.c.l.b16 %v52
  %v95 = vunpack.c.l.b16 %v53
  %v96 = vpack.c.b16 %v95, %v94
  %vm98 = vcmask 130048
  %v100 = vsel %vm98, %v90, 0
  %v103 = vsel %vm98, %v91, 0
  %105 = vmatpush.bf16.msra.mxu0 0
  %106 = vmatpush.bf16.msra.mxu0 0
  %107 = vmatpush.bf16.msra.mxu0 0
  %108 = vmatpush.bf16.msra.mxu0 0
  %109 = vmatpush.bf16.msra.mxu0 0
  %110 = vmatpush.bf16.msra.mxu0 0
  %111 = vmatpush.bf16.msra.mxu0 0
  %112 = vmatpush.bf16.msra.mxu0 %v96
  %113 = vmatmul.bf16.gmra.mxu0 %v100
  %v114 = vpop.f32.mrf.mxu0
  %v115 = vadd.f32 %v65, %v114
  %v116 = vpop.f32.mrf.mxu0
  %v117 = vadd.f32 %v70, %v116
  %118 = vmatmul.bf16.gmra.mxu0 %v103
  %v119 = vpop.f32.mrf.mxu0
  %v120 = vadd.f32 %v75, %v119
  %v121 = vpop.f32.mrf.mxu0
  %v122 = vadd.f32 %v80, %v121
  %123 = vdwg.mxu0
  %v124 = vmul.f32 %v115, %v115
  %v125 = vmul.f32 %v117, %v117
  %v126 = vmul.f32 %v120, %v120
  %v127 = vmul.f32 %v122, %v122
  %v128 = vadd.f32 %v124, %v125
  %v129 = vadd.f32 %v128, %v126
  %v130 = vadd.f32 %v129, %v127
  %v131 = vrot.slane %v130, 4
  %v132 = vadd.f32 %v130, %v131
  %v133 = vrot.slane %v132, 2
  %v134 = vadd.f32 %v132, %v133
  %v135 = vrot.slane %v134, 1
  %v136 = vadd.f32 %v134, %v135
  %v137 = vmax.f32 %v136, 1e-24
  %v138 = vrsqrt.pop %v137
  %v139 = vmul.f32 %v138, %v137
  %v140 = vmul.f32 %v139, %v138
  %v141 = vmul.f32 0.5, %v140
  %v142 = vsub.f32 1.5, %v141
  %v143 = vmul.f32 %v138, %v142
  %vm144 = vweird.f32 %v137
  %vm145 = vweird.f32 %v138
  %vm146 = vmor %vm144, %vm145
  %v147 = vsel %vm146, %v138, %v143
  %v148 = vmul.f32 %v147, 1.8
  %v149 = vmul.f32 %v115, %v148
  %v150 = vmul.f32 %v117, %v148
  %v151 = vmul.f32 %v120, %v148
  %v152 = vmul.f32 %v122, %v148
  %v153 = vmul.f32 %v149, 0.15
  %v154 = vmul.f32 %v150, 0.15
  %v155 = vmul.f32 %v151, 0.15
  %v156 = vmul.f32 %v152, 0.15
  %v157 = vpack.c.bf16 %v150, %v149
  %v158 = vpack.c.bf16 %v152, %v151
  %v175 = vunpack.c.l.b16 %v36
  %v176 = vunpack.c.l.b16 %v37
  %v177 = vunpack.c.l.b16 %v38
  %v178 = vunpack.c.l.b16 %v39
  %v179 = vunpack.c.l.b16 %v40
  %v180 = vunpack.c.l.b16 %v41
  %v181 = vunpack.c.l.b16 %v42
  %v182 = vunpack.c.l.b16 %v43
  %v183 = vunpack.c.l.b16 %v44
  %v184 = vunpack.c.l.b16 %v45
  %v185 = vunpack.c.l.b16 %v46
  %v186 = vunpack.c.l.b16 %v47
  %v187 = vunpack.c.l.b16 %v48
  %v188 = vunpack.c.l.b16 %v49
  %v189 = vunpack.c.l.b16 %v50
  %v190 = vunpack.c.l.b16 %v51
  %v191 = vpack.c.b16 %v176, %v175
  %v192 = vpack.c.b16 %v178, %v177
  %v193 = vpack.c.b16 %v180, %v179
  %v194 = vpack.c.b16 %v182, %v181
  %v195 = vpack.c.b16 %v184, %v183
  %v196 = vpack.c.b16 %v186, %v185
  %v197 = vpack.c.b16 %v188, %v187
  %v198 = vpack.c.b16 %v190, %v189
  %207 = vmatpush.bf16.msra.mxu0 %v198
  %208 = vmatpush.bf16.msra.mxu0 %v197
  %209 = vmatpush.bf16.msra.mxu0 %v196
  %210 = vmatpush.bf16.msra.mxu0 %v195
  %211 = vmatpush.bf16.msra.mxu0 %v194
  %212 = vmatpush.bf16.msra.mxu0 %v193
  %213 = vmatpush.bf16.msra.mxu0 %v192
  %214 = vmatpush.bf16.msra.mxu0 %v191
  %215 = vmatmul.bf16.gmra.mxu0 %v157
  %v216 = vpop.f32.mrf.mxu0
  %v217 = vadd.f32 %v153, %v216
  %v218 = vpop.f32.mrf.mxu0
  %v219 = vadd.f32 %v154, %v218
  %220 = vmatmul.bf16.gmra.mxu0 %v158
  %v221 = vpop.f32.mrf.mxu0
  %v222 = vadd.f32 %v155, %v221
  %v223 = vpop.f32.mrf.mxu0
  %v224 = vadd.f32 %v156, %v223
  %225 = vdwg.mxu0
  %v226 = vpack.c.bf16 %v219, %v217
  %v227 = vpack.c.bf16 %v224, %v222
  %228 = vmatpush.bf16.msra.mxu0 %v198
  %229 = vmatpush.bf16.msra.mxu0 %v197
  %230 = vmatpush.bf16.msra.mxu0 %v196
  %231 = vmatpush.bf16.msra.mxu0 %v195
  %232 = vmatpush.bf16.msra.mxu0 %v194
  %233 = vmatpush.bf16.msra.mxu0 %v193
  %234 = vmatpush.bf16.msra.mxu0 %v192
  %235 = vmatpush.bf16.msra.mxu0 %v191
  %236 = vmatmul.bf16.gmra.mxu0 %v226
  %v237 = vpop.f32.mrf.mxu0
  %v238 = vadd.f32 %v153, %v237
  %v239 = vpop.f32.mrf.mxu0
  %v240 = vadd.f32 %v154, %v239
  %241 = vmatmul.bf16.gmra.mxu0 %v227
  %v242 = vpop.f32.mrf.mxu0
  %v243 = vadd.f32 %v155, %v242
  %v244 = vpop.f32.mrf.mxu0
  %v245 = vadd.f32 %v156, %v244
  %246 = vdwg.mxu0
  %v247 = vmax.f32 %v238, 0.0
  %v248 = vmax.f32 %v240, 0.0
  %v249 = vmax.f32 %v243, 0.0
  %v250 = vmax.f32 %v245, 0.0
  %v251 = vld [vmem:[%s4] sm:$0xf]
  %v252 = vld [vmem:[%s4 + $0x4] sm:$0xf]
  %v253 = vld [vmem:[%s4 + $0x8] sm:$0xf]
  %v254 = vld [vmem:[%s4 + $0xc] sm:$0xf]
  %v255 = vpack.c.bf16 %v248, %v247
  %v256 = vpack.c.bf16 %v250, %v249
  %v257 = vld [vmem:[%s5] sm:$0xff]
  %v258 = vld [vmem:[%s5 + $0x8] sm:$0xff]
  %v259 = vld [vmem:[%s5 + $0x10] sm:$0xff]
  %v260 = vld [vmem:[%s5 + $0x18] sm:$0xff]
  %262 = vset.pattern.permute.xlu0 0
  %263 = vperm.xlu0 %262, %v257
  %v264 = vpop.permute.xlu0 %263
  %267 = vset.pattern.permute.xlu0 0
  %268 = vperm.xlu0 %267, %v258
  %v269 = vpop.permute.xlu0 %268
  %272 = vset.pattern.permute.xlu0 0
  %273 = vperm.xlu0 %272, %v259
  %v274 = vpop.permute.xlu0 %273
  %277 = vset.pattern.permute.xlu0 0
  %278 = vperm.xlu0 %277, %v260
  %v279 = vpop.permute.xlu0 %278
  %v285 = vunpack.c.l.b16 %v251
  %v286 = vunpack.c.l.b16 %v252
  %v287 = vunpack.c.l.b16 %v253
  %v288 = vunpack.c.l.b16 %v254
  %v289 = vpack.c.b16 %v286, %v285
  %v290 = vpack.c.b16 %v288, %v287
  %vm291 = vcmask 261120
  %v293 = vsel %vm291, %v289, 0
  %v296 = vsel %vm291, %v290, 0
  %298 = vmatpush.bf16.msra.mxu0 0
  %299 = vmatpush.bf16.msra.mxu0 0
  %300 = vmatpush.bf16.msra.mxu0 0
  %301 = vmatpush.bf16.msra.mxu0 0
  %302 = vmatpush.bf16.msra.mxu0 0
  %303 = vmatpush.bf16.msra.mxu0 0
  %304 = vmatpush.bf16.msra.mxu0 %v256
  %305 = vmatpush.bf16.msra.mxu0 %v255
  %306 = vmatmul.bf16.gmra.mxu0 %v293
  %v307 = vpop.f32.mrf.mxu0
  %v308 = vadd.f32 %v264, %v307
  %v309 = vpop.f32.mrf.mxu0
  %v310 = vadd.f32 %v269, %v309
  %311 = vmatmul.bf16.gmra.mxu0 %v296
  %v312 = vpop.f32.mrf.mxu0
  %v313 = vadd.f32 %v274, %v312
  %v314 = vpop.f32.mrf.mxu0
  %v315 = vadd.f32 %v279, %v314
  %316 = vdwg.mxu0
  %v317 = vmul.f32 %v308, %v308
  %v318 = vmul.f32 %v310, %v310
  %v319 = vmul.f32 %v313, %v313
  %v320 = vmul.f32 %v315, %v315
  %v321 = vadd.f32 %v317, %v318
  %v322 = vadd.f32 %v321, %v319
  %v323 = vadd.f32 %v322, %v320
  %v324 = vrot.slane %v323, 4
  %v325 = vadd.f32 %v323, %v324
  %v326 = vrot.slane %v325, 2
  %v327 = vadd.f32 %v325, %v326
  %v328 = vrot.slane %v327, 1
  %v329 = vadd.f32 %v327, %v328
  %v330 = vmax.f32 %v329, 1e-24
  %v331 = vrsqrt.pop %v330
  %v332 = vmul.f32 %v331, %v330
  %v333 = vmul.f32 %v332, %v331
  %v334 = vmul.f32 0.5, %v333
  %v335 = vsub.f32 1.5, %v334
  %v336 = vmul.f32 %v331, %v335
  %vm337 = vweird.f32 %v330
  %vm338 = vweird.f32 %v331
  %vm339 = vmor %vm337, %vm338
  %v340 = vsel %vm339, %v331, %v336
  %v341 = vmul.f32 %v340, 1.8
  %v342 = vmul.f32 %v308, %v341
  %v343 = vmul.f32 %v310, %v341
  %v344 = vmul.f32 %v313, %v341
  %v345 = vmul.f32 %v315, %v341
  %v346 = vmul.f32 %v342, 0.15
  %v347 = vmul.f32 %v343, 0.15
  %v348 = vmul.f32 %v344, 0.15
  %v349 = vmul.f32 %v345, 0.15
  %v350 = vpack.c.bf16 %v343, %v342
  %v351 = vpack.c.bf16 %v345, %v344
  %352 = vmatpush.bf16.msra.mxu0 %v198
  %353 = vmatpush.bf16.msra.mxu0 %v197
  %354 = vmatpush.bf16.msra.mxu0 %v196
  %355 = vmatpush.bf16.msra.mxu0 %v195
  %356 = vmatpush.bf16.msra.mxu0 %v194
  %357 = vmatpush.bf16.msra.mxu0 %v193
  %358 = vmatpush.bf16.msra.mxu0 %v192
  %359 = vmatpush.bf16.msra.mxu0 %v191
  %360 = vmatmul.bf16.gmra.mxu0 %v350
  %v361 = vpop.f32.mrf.mxu0
  %v362 = vadd.f32 %v346, %v361
  %v363 = vpop.f32.mrf.mxu0
  %v364 = vadd.f32 %v347, %v363
  %365 = vmatmul.bf16.gmra.mxu0 %v351
  %v366 = vpop.f32.mrf.mxu0
  %v367 = vadd.f32 %v348, %v366
  %v368 = vpop.f32.mrf.mxu0
  %v369 = vadd.f32 %v349, %v368
  %370 = vdwg.mxu0
  %v371 = vpack.c.bf16 %v364, %v362
  %v372 = vpack.c.bf16 %v369, %v367
  %373 = vmatpush.bf16.msra.mxu0 %v198
  %374 = vmatpush.bf16.msra.mxu0 %v197
  %375 = vmatpush.bf16.msra.mxu0 %v196
  %376 = vmatpush.bf16.msra.mxu0 %v195
  %377 = vmatpush.bf16.msra.mxu0 %v194
  %378 = vmatpush.bf16.msra.mxu0 %v193
  %379 = vmatpush.bf16.msra.mxu0 %v192
  %380 = vmatpush.bf16.msra.mxu0 %v191
  %381 = vmatmul.bf16.gmra.mxu0 %v371
  %v382 = vpop.f32.mrf.mxu0
  %v383 = vadd.f32 %v346, %v382
  %v384 = vpop.f32.mrf.mxu0
  %v385 = vadd.f32 %v347, %v384
  %386 = vmatmul.bf16.gmra.mxu0 %v372
  %v387 = vpop.f32.mrf.mxu0
  %v388 = vadd.f32 %v348, %v387
  %v389 = vpop.f32.mrf.mxu0
  %v390 = vadd.f32 %v349, %v389
  %391 = vdwg.mxu0
  %v392 = vmax.f32 %v383, 0.0
  %v393 = vmax.f32 %v385, 0.0
  %v394 = vmax.f32 %v388, 0.0
  %v395 = vmax.f32 %v390, 0.0
  %v396 = vld [vmem:[%s6] sm:$0xf]
  %v397 = vld [vmem:[%s6 + $0x4] sm:$0xf]
  %v398 = vld [vmem:[%s6 + $0x8] sm:$0xf]
  %v399 = vld [vmem:[%s6 + $0xc] sm:$0xf]
  %v400 = vpack.c.bf16 %v393, %v392
  %v401 = vpack.c.bf16 %v395, %v394
  %v402 = vld [vmem:[%s7] sm:$0xff]
  %v403 = vld [vmem:[%s7 + $0x8] sm:$0xff]
  %v404 = vld [vmem:[%s7 + $0x10] sm:$0xff]
  %v405 = vld [vmem:[%s7 + $0x18] sm:$0xff]
  %407 = vset.pattern.permute.xlu0 0
  %408 = vperm.xlu0 %407, %v402
  %v409 = vpop.permute.xlu0 %408
  %412 = vset.pattern.permute.xlu0 0
  %413 = vperm.xlu0 %412, %v403
  %v414 = vpop.permute.xlu0 %413
  %417 = vset.pattern.permute.xlu0 0
  %418 = vperm.xlu0 %417, %v404
  %v419 = vpop.permute.xlu0 %418
  %422 = vset.pattern.permute.xlu0 0
  %423 = vperm.xlu0 %422, %v405
  %v424 = vpop.permute.xlu0 %423
  %v430 = vunpack.c.l.b16 %v396
  %v431 = vunpack.c.l.b16 %v397
  %v432 = vunpack.c.l.b16 %v398
  %v433 = vunpack.c.l.b16 %v399
  %v434 = vpack.c.b16 %v431, %v430
  %v435 = vpack.c.b16 %v433, %v432
  %v437 = vsel %vm291, %v434, 0
  %v440 = vsel %vm291, %v435, 0
  %442 = vmatpush.bf16.msra.mxu0 0
  %443 = vmatpush.bf16.msra.mxu0 0
  %444 = vmatpush.bf16.msra.mxu0 0
  %445 = vmatpush.bf16.msra.mxu0 0
  %446 = vmatpush.bf16.msra.mxu0 0
  %447 = vmatpush.bf16.msra.mxu0 0
  %448 = vmatpush.bf16.msra.mxu0 %v401
  %449 = vmatpush.bf16.msra.mxu0 %v400
  %450 = vmatmul.bf16.gmra.mxu0 %v437
  %v451 = vpop.f32.mrf.mxu0
  %v452 = vadd.f32 %v409, %v451
  %v453 = vpop.f32.mrf.mxu0
  %v454 = vadd.f32 %v414, %v453
  %455 = vmatmul.bf16.gmra.mxu0 %v440
  %v456 = vpop.f32.mrf.mxu0
  %v457 = vadd.f32 %v419, %v456
  %v458 = vpop.f32.mrf.mxu0
  %v459 = vadd.f32 %v424, %v458
  %460 = vdwg.mxu0
  %v461 = vmul.f32 %v452, %v452
  %v462 = vmul.f32 %v454, %v454
  %v463 = vmul.f32 %v457, %v457
  %v464 = vmul.f32 %v459, %v459
  %v465 = vadd.f32 %v461, %v462
  %v466 = vadd.f32 %v465, %v463
  %v467 = vadd.f32 %v466, %v464
  %v468 = vrot.slane %v467, 4
  %v469 = vadd.f32 %v467, %v468
  %v470 = vrot.slane %v469, 2
  %v471 = vadd.f32 %v469, %v470
  %v472 = vrot.slane %v471, 1
  %v473 = vadd.f32 %v471, %v472
  %v474 = vmax.f32 %v473, 1e-24
  %v475 = vrsqrt.pop %v474
  %v476 = vmul.f32 %v475, %v474
  %v477 = vmul.f32 %v476, %v475
  %v478 = vmul.f32 0.5, %v477
  %v479 = vsub.f32 1.5, %v478
  %v480 = vmul.f32 %v475, %v479
  %vm481 = vweird.f32 %v474
  %vm482 = vweird.f32 %v475
  %vm483 = vmor %vm481, %vm482
  %v484 = vsel %vm483, %v475, %v480
  %v485 = vmul.f32 %v484, 1.8
  %v486 = vmul.f32 %v452, %v485
  %v487 = vmul.f32 %v454, %v485
  %v488 = vmul.f32 %v457, %v485
  %v489 = vmul.f32 %v459, %v485
  %v490 = vmul.f32 %v486, 0.15
  %v491 = vmul.f32 %v487, 0.15
  %v492 = vmul.f32 %v488, 0.15
  %v493 = vmul.f32 %v489, 0.15
  %v494 = vpack.c.bf16 %v487, %v486
  %v495 = vpack.c.bf16 %v489, %v488
  %496 = vmatpush.bf16.msra.mxu0 %v198
  %497 = vmatpush.bf16.msra.mxu0 %v197
  %498 = vmatpush.bf16.msra.mxu0 %v196
  %499 = vmatpush.bf16.msra.mxu0 %v195
  %500 = vmatpush.bf16.msra.mxu0 %v194
  %501 = vmatpush.bf16.msra.mxu0 %v193
  %502 = vmatpush.bf16.msra.mxu0 %v192
  %503 = vmatpush.bf16.msra.mxu0 %v191
  %504 = vmatmul.bf16.gmra.mxu0 %v494
  %v505 = vpop.f32.mrf.mxu0
  %v506 = vadd.f32 %v490, %v505
  %v507 = vpop.f32.mrf.mxu0
  %v508 = vadd.f32 %v491, %v507
  %509 = vmatmul.bf16.gmra.mxu0 %v495
  %v510 = vpop.f32.mrf.mxu0
  %v511 = vadd.f32 %v492, %v510
  %v512 = vpop.f32.mrf.mxu0
  %v513 = vadd.f32 %v493, %v512
  %514 = vdwg.mxu0
  %v515 = vpack.c.bf16 %v508, %v506
  %v516 = vpack.c.bf16 %v513, %v511
  %517 = vmatpush.bf16.msra.mxu0 %v198
  %518 = vmatpush.bf16.msra.mxu0 %v197
  %519 = vmatpush.bf16.msra.mxu0 %v196
  %520 = vmatpush.bf16.msra.mxu0 %v195
  %521 = vmatpush.bf16.msra.mxu0 %v194
  %522 = vmatpush.bf16.msra.mxu0 %v193
  %523 = vmatpush.bf16.msra.mxu0 %v192
  %524 = vmatpush.bf16.msra.mxu0 %v191
  %525 = vmatmul.bf16.gmra.mxu0 %v515
  %v526 = vpop.f32.mrf.mxu0
  %v527 = vadd.f32 %v490, %v526
  %v528 = vpop.f32.mrf.mxu0
  %v529 = vadd.f32 %v491, %v528
  %530 = vmatmul.bf16.gmra.mxu0 %v516
  %v531 = vpop.f32.mrf.mxu0
  %v532 = vadd.f32 %v492, %v531
  %v533 = vpop.f32.mrf.mxu0
  %v534 = vadd.f32 %v493, %v533
  %535 = vdwg.mxu0
  %v536 = vld [vmem:[%s8] sm:$0xf]
  %v537 = vld [vmem:[%s8 + $0x4] sm:$0xf]
  %v538 = vld [vmem:[%s8 + $0x8] sm:$0xf]
  %v539 = vld [vmem:[%s8 + $0xc] sm:$0xf]
  %v540 = vpack.c.bf16 %v529, %v527
  %v541 = vpack.c.bf16 %v534, %v532
  %v542 = vld [vmem:[%s9] sm:$0xff]
  %v543 = vld [vmem:[%s9 + $0x8] sm:$0xff]
  %v544 = vld [vmem:[%s9 + $0x10] sm:$0xff]
  %v545 = vld [vmem:[%s9 + $0x18] sm:$0xff]
  %547 = vset.pattern.permute.xlu0 0
  %548 = vperm.xlu0 %547, %v542
  %v549 = vpop.permute.xlu0 %548
  %552 = vset.pattern.permute.xlu0 0
  %553 = vperm.xlu0 %552, %v543
  %v554 = vpop.permute.xlu0 %553
  %557 = vset.pattern.permute.xlu0 0
  %558 = vperm.xlu0 %557, %v544
  %v559 = vpop.permute.xlu0 %558
  %562 = vset.pattern.permute.xlu0 0
  %563 = vperm.xlu0 %562, %v545
  %v564 = vpop.permute.xlu0 %563
  %v570 = vunpack.c.l.b16 %v536
  %v571 = vunpack.c.l.b16 %v537
  %v572 = vunpack.c.l.b16 %v538
  %v573 = vunpack.c.l.b16 %v539
  %v574 = vpack.c.b16 %v571, %v570
  %v575 = vpack.c.b16 %v573, %v572
  %v577 = vsel %vm291, %v574, 0
  %v580 = vsel %vm291, %v575, 0
  %582 = vmatpush.bf16.msra.mxu0 0
  %583 = vmatpush.bf16.msra.mxu0 0
  %584 = vmatpush.bf16.msra.mxu0 0
  %585 = vmatpush.bf16.msra.mxu0 0
  %586 = vmatpush.bf16.msra.mxu0 0
  %587 = vmatpush.bf16.msra.mxu0 0
  %588 = vmatpush.bf16.msra.mxu0 %v541
  %589 = vmatpush.bf16.msra.mxu0 %v540
  %590 = vmatmul.bf16.gmra.mxu0 %v577
  %v591 = vpop.f32.mrf.mxu0
  %v592 = vadd.f32 %v549, %v591
  %v593 = vpop.f32.mrf.mxu0
  %v594 = vadd.f32 %v554, %v593
  %595 = vmatmul.bf16.gmra.mxu0 %v580
  %v596 = vpop.f32.mrf.mxu0
  %v597 = vadd.f32 %v559, %v596
  %v598 = vpop.f32.mrf.mxu0
  %v599 = vadd.f32 %v564, %v598
  %600 = vdwg.mxu0
  %v601 = vmul.f32 %v592, %v592
  %v602 = vmul.f32 %v594, %v594
  %v603 = vadd.f32 %v601, %v602
  %v604 = vrot.slane %v603, 4
  %v605 = vadd.f32 %v603, %v604
  %v606 = vrot.slane %v605, 2
  %v607 = vadd.f32 %v605, %v606
  %v608 = vrot.slane %v607, 1
  %v609 = vadd.f32 %v607, %v608
  %v610 = vmax.f32 %v609, 1e-24
  %v611 = vrsqrt.pop %v610
  %v612 = vmul.f32 %v611, %v610
  %v613 = vmul.f32 %v612, %v611
  %v614 = vmul.f32 0.5, %v613
  %v615 = vsub.f32 1.5, %v614
  %v616 = vmul.f32 %v611, %v615
  %vm617 = vweird.f32 %v610
  %vm618 = vweird.f32 %v611
  %vm619 = vmor %vm617, %vm618
  %v620 = vsel %vm619, %v611, %v616
  %v621 = vmul.f32 %v597, %v597
  %v622 = vmul.f32 %v599, %v599
  %v623 = vadd.f32 %v621, %v622
  %v624 = vrot.slane %v623, 4
  %v625 = vadd.f32 %v623, %v624
  %v626 = vrot.slane %v625, 2
  %v627 = vadd.f32 %v625, %v626
  %v628 = vrot.slane %v627, 1
  %v629 = vadd.f32 %v627, %v628
  %v630 = vmax.f32 %v629, 1e-24
  %v631 = vrsqrt.pop %v630
  %v632 = vmul.f32 %v631, %v630
  %v633 = vmul.f32 %v632, %v631
  %v634 = vmul.f32 0.5, %v633
  %v635 = vsub.f32 1.5, %v634
  %v636 = vmul.f32 %v631, %v635
  %vm637 = vweird.f32 %v630
  %vm638 = vweird.f32 %v631
  %vm639 = vmor %vm637, %vm638
  %v640 = vsel %vm639, %v631, %v636
  %v641 = vmul.f32 %v620, 1.8
  %v642 = vmul.f32 %v592, %v641
  %v643 = vmul.f32 %v594, %v641
  %v644 = vmul.f32 %v640, 1.8
  %v645 = vmul.f32 %v597, %v644
  %v646 = vmul.f32 %v599, %v644
  %v647 = vmul.f32 %v642, 0.15
  %v648 = vmul.f32 %v643, 0.15
  %v649 = vmul.f32 %v645, 0.15
  %v650 = vmul.f32 %v646, 0.15
  %v651 = vpack.c.bf16 %v643, %v642
  %v652 = vpack.c.bf16 %v646, %v645
  %653 = vmatpush.bf16.msra.mxu0 %v198
  %654 = vmatpush.bf16.msra.mxu0 %v197
  %655 = vmatpush.bf16.msra.mxu0 %v196
  %656 = vmatpush.bf16.msra.mxu0 %v195
  %657 = vmatpush.bf16.msra.mxu0 %v194
  %658 = vmatpush.bf16.msra.mxu0 %v193
  %659 = vmatpush.bf16.msra.mxu0 %v192
  %660 = vmatpush.bf16.msra.mxu0 %v191
  %661 = vmatmul.bf16.gmra.mxu0 %v651
  %v662 = vpop.f32.mrf.mxu0
  %v663 = vadd.f32 %v647, %v662
  %v664 = vpop.f32.mrf.mxu0
  %v665 = vadd.f32 %v648, %v664
  %666 = vmatmul.bf16.gmra.mxu0 %v652
  %v667 = vpop.f32.mrf.mxu0
  %v668 = vadd.f32 %v649, %v667
  %v669 = vpop.f32.mrf.mxu0
  %v670 = vadd.f32 %v650, %v669
  %671 = vdwg.mxu0
  %v672 = vpack.c.bf16 %v665, %v663
  %v673 = vpack.c.bf16 %v670, %v668
  %674 = vmatpush.bf16.msra.mxu0 %v198
  %675 = vmatpush.bf16.msra.mxu0 %v197
  %676 = vmatpush.bf16.msra.mxu0 %v196
  %677 = vmatpush.bf16.msra.mxu0 %v195
  %678 = vmatpush.bf16.msra.mxu0 %v194
  %679 = vmatpush.bf16.msra.mxu0 %v193
  %680 = vmatpush.bf16.msra.mxu0 %v192
  %681 = vmatpush.bf16.msra.mxu0 %v191
  %682 = vmatmul.bf16.gmra.mxu0 %v672
  %v683 = vpop.f32.mrf.mxu0
  %v684 = vadd.f32 %v647, %v683
  %v685 = vpop.f32.mrf.mxu0
  %v686 = vadd.f32 %v648, %v685
  %687 = vmatmul.bf16.gmra.mxu0 %v673
  %v688 = vpop.f32.mrf.mxu0
  %v689 = vadd.f32 %v649, %v688
  %v690 = vpop.f32.mrf.mxu0
  %v691 = vadd.f32 %v650, %v690
  %692 = vdwg.mxu0
  %693 = vst [vmem:[%s10] sm:$0xff] %v684
  %694 = vst [vmem:[%s10 + $0x8] sm:$0xff] %v686
  %695 = vst [vmem:[%s10 + $0x10] sm:$0xff] %v689
  %696 = vst [vmem:[%s10 + $0x18] sm:$0xff] %v691
  // Predicated region
  $region42: #{_fwd.1} parent=0 // pred_check
    _
  $region43: #{_fwd.1} parent=0 // pred_check_branch
    %698 = sbr.rel (0) target = $region45
  $region44: #{_fwd.1} parent=0 // pred_region
    _
  $region45: #{_fwd.1} parent=0 // pred_fallthru
    _
  // Predicated region
  $region46: #{_fwd.1} parent=0 // pred_check
    _
  $region47: #{_fwd.1} parent=0 // pred_check_branch
    %700 = sbr.rel (0) target = $region49
  $region48: #{_fwd.1} parent=0 // pred_region
    _
  $region49: #{_fwd.1} parent=0 // pred_fallthru
    _

</llo_original>
